<compile_context>
chip_gen: v7x
topology: tpu7x:2x2x1
jax: 0.10.0
libtpu: 0.0.40
codegen_flags: <defaults>
</compile_context>

<pallas_src>
import jax
import jax.numpy as jnp
from jax.experimental import pallas as pl
from jax.experimental.pallas import tpu as pltpu


_FULL_UNROLL_MAX = 256   # fully static straight-line node walk below this node count
_UNROLL = 8              # software-unroll factor for the dynamic fori_loop path


# ----------------------------- Fused Pallas kernel -----------------------------

def _make_tree_kernel(n_nodes, n_pad, parents, batches, neg_inf_rows):
    """Build the fused tree-encoder kernel, specialized on the trace-time tree structure.

    parents / batches : Python int lists (len n_nodes) with sentinels already remapped
                        (root parent -> dummy acc row n_pad, not-in-node_list batch -> dummy out
                        row).  Used as compile-time constants on the fully-unrolled path, read
                        from the SMEM tables otherwise.
    neg_inf_rows      : output rows whose running max must NOT include 0 (every node_list entry
                        covers them); all other rows start at 0.0, matching the reference's
                        all-zero uncovered rows.
    """
    full_unroll = n_nodes <= _FULL_UNROLL_MAX

    def kernel(par_ref, bat_ref, emb_ref, w_ref, b_ref, o_ref, acc_ref):
        n_out, d = o_ref.shape

        # ---- prologue A: fused projection — ONE MXU matmul over the N used embedding rows.
        #      acc[n] starts at emb[tok[n]] @ W_c + b_c; descendants then fold their hidden state
        #      into it, so by the time node n is visited acc[n] == its full hidden state h_n.
        acc_ref[pl.ds(0, n_pad), :] = (
            jnp.dot(emb_ref[...], w_ref[...], preferred_element_type=jnp.float32) + b_ref[...]
        )
        acc_ref[pl.ds(n_pad, 8), :] = jnp.zeros((8, d), jnp.float32)  # dummy parent rows (roots)

        # ---- prologue B: running-max init (== torch.max over node_list, fused).
        #      0.0 participates for row b iff some node_list entry leaves row b at zero.
        if neg_inf_rows:
            row_id = jax.lax.broadcasted_iota(jnp.int32, (n_out, d), 0)
            mask = row_id == neg_inf_rows[0]
            for r in neg_inf_rows[1:]:
                mask = jnp.logical_or(mask, row_id == r)
            o_ref[...] = jnp.where(mask, -jnp.inf, 0.0).astype(jnp.float32)
        else:
            o_ref[...] = jnp.zeros((n_out, d), jnp.float32)

        # ---- main walk: descendants strictly before ancestors (reverse creation order).
        def visit(n, p, b):
            h = acc_ref[pl.ds(n, 1), :]                                     # (1, D) hidden state
            acc_ref[pl.ds(p, 1), :] = acc_ref[pl.ds(p, 1), :] + h           # fold into parent
            o_ref[pl.ds(b, 1), :] = jnp.maximum(o_ref[pl.ds(b, 1), :], h)   # fused running max

        if full_unroll:
            # Fully static straight-line body: row indices are compile-time constants, so the
            # scheduler can disambiguate rows and overlap independent node updates.
            for n in range(n_nodes - 1, -1, -1):
                visit(n, parents[n], batches[n])
        else:
            # Dynamic path for big trees: SMEM tables + software-unrolled loop so scalar loads of
            # iterations n+1..n+k overlap the add/max/stores of iteration n.
            # TODO(synk): level/wavefront batching — process each tree depth as one (L, D) block
            # and scatter child sums with a per-level one-hot MXU matmul to cut the dependent
            # chain from N to tree depth (and shard by batch across v7x's two TensorCores).
            def body(s, carry):
                n = (n_nodes - 1) - s
                visit(n, par_ref[n], bat_ref[n])
                return carry

            jax.lax.fori_loop(0, n_nodes, body, 0, unroll=min(_UNROLL, n_nodes))

    return kernel


# ----------------------------- Module (traversal = trace-time glue) -----------------------------

class BatchTreeEncoderPallas:
    def __init__(self, vocab_size, embedding_dim, encode_dim, batch_size, key):
        assert embedding_dim == encode_dim, "reference semantics require embedding_dim == encode_dim"
        self.embedding_dim = embedding_dim
        self.encode_dim = encode_dim
        self.batch_size = batch_size
        k = jax.random.split(key, 7)
        self.embedding = 0.1 * jax.random.normal(k[0], (vocab_size, embedding_dim), jnp.float32)
        self.Wc_w = 0.1 * jax.random.normal(k[1], (embedding_dim, encode_dim), jnp.float32)
        self.Wc_b = 0.1 * jax.random.normal(k[2], (encode_dim,), jnp.float32)
        # W_l / W_r / activation are declared in the PyTorch __init__ but never used in forward.
        self.Wl_w = 0.1 * jax.random.normal(k[3], (encode_dim, encode_dim), jnp.float32)
        self.Wl_b = 0.1 * jax.random.normal(k[4], (encode_dim,), jnp.float32)
        self.Wr_w = 0.1 * jax.random.normal(k[5], (encode_dim, encode_dim), jnp.float32)
        self.Wr_b = 0.1 * jax.random.normal(k[6], (encode_dim,), jnp.float32)

    # --- trace-time structural flattening of the reference recursion (no numeric work) ---
    def _flatten(self, node, batch_index, store):
        size = len(node)
        if not size:
            return None
        row_node_id = [None] * size
        children_index, children = [], []
        all_valid = True
        for i in range(size):
            if node[i][0] != -1:
                nid = len(store["token"])
                row_node_id[i] = nid
                store["token"].append(int(node[i][0]))
                store["parent"].append(-1)        # filled when this node shows up as a child row
                store["batch"].append(-1)         # filled below iff this call appends to node_list
                temp = node[i][1:]
                for j in range(len(temp)):
                    if temp[j][0] != -1:
                        if len(children_index) <= j:
                            children_index.append([i])
                            children.append([temp[j]])
                        else:
                            children_index[j].append(i)
                            children[j].append(temp[j])
            else:
                all_valid = False
                batch_index[i] = -1
        if all_valid:                              # reference: this call appends a node_list entry
            store["entry_batches"].append({int(batch_index[i]) for i in range(size)})
            for i in range(size):
                store["batch"][row_node_id[i]] = int(batch_index[i])
        for c in range(len(children)):
            bci = [batch_index[i] for i in children_index[c]]
            child_rows = self._flatten(children[c], bci, store)
            if child_rows is not None:
                for k, i in enumerate(children_index[c]):
                    store["parent"][child_rows[k]] = row_node_id[i]
        return row_node_id

    def forward(self, x, bs):
        self.batch_size = bs
        store = {"token": [], "parent": [], "batch": [], "entry_batches": []}
        self._flatten(x, list(range(bs)), store)
        n_nodes = len(store["token"])
        if n_nodes == 0 or not store["entry_batches"]:
            # Reference crashes on torch.stack([]) in this case; keep the failure explicit.
            raise ValueError("empty node_list")

        D = self.encode_dim
        E = self.embedding_dim
        n_pad = max(8, ((n_nodes + 7) // 8) * 8)

        # Gather ONLY the used embedding rows, in node order (zero-token padding rows are never
        # read back).  The kernel's projection block is then (n_pad, E), not (vocab, E), and the
        # hot loop indexes acc by node id directly — no per-node vocab gather.
        tok = store["token"] + [0] * (n_pad - n_nodes)
        emb_rows = self.embedding[jnp.asarray(tok, jnp.int32)]            # XLA gather (wrapper glue)

        parents = [p if p >= 0 else n_pad for p in store["parent"]]       # roots -> dummy acc row
        batches = [b if b >= 0 else bs for b in store["batch"]]           # no entry -> dummy out row
        par = jnp.asarray(parents, jnp.int32)
        bat = jnp.asarray(batches, jnp.int32)

        # -inf init only for rows covered by EVERY node_list entry (no all-zero row participates).
        # NOTE: the fused max assumes each node_list entry maps distinct batch indices (true for
        # the reference recursion).
        neg_inf_rows = tuple(
            b for b in range(bs) if all(b in s for s in store["entry_batches"])
        )

        kernel = _make_tree_kernel(n_nodes, n_pad, parents, batches, neg_inf_rows)

        # Explicit VMEM budget (everything is a flat (rows, D) buffer now — no 8x padding waste).
        def rup(v, m):
            return ((v + m - 1) // m) * m

        lane_d = rup(D, 128)
        vmem_bytes = 4 * (
            n_pad * rup(E, 128)            # gathered embedding rows
            + rup(E, 8) * lane_d           # W_c
            + 8 * lane_d                   # b_c
            + rup(bs + 1, 8) * lane_d      # output / running max
            + (n_pad + 8) * lane_d         # acc scratch
        )
        vmem_limit = int(min(max(2 * vmem_bytes + (2 << 20), 8 << 20), 32 << 20))

        smem = pl.BlockSpec(memory_space=pltpu.MemorySpace.SMEM)
        vmem = pl.BlockSpec(memory_space=pltpu.MemorySpace.VMEM)
        out = pl.pallas_call(
            kernel,
            out_shape=jax.ShapeDtypeStruct((bs + 1, D), jnp.float32),
            in_specs=[smem, smem, vmem, vmem, vmem],
            out_specs=vmem,
            scratch_shapes=[pltpu.VMEM((n_pad + 8, D), jnp.float32)],
            compiler_params=pltpu.CompilerParams(vmem_limit_bytes=vmem_limit),
        )(par, bat, emb_rows, self.Wc_w, self.Wc_b.reshape(1, D))
        return out[:bs, :]


# ----------------------------- Pure-JAX reference (mirrors the PyTorch recursion) -----------------

def reference_forward(enc, x, bs):
    node_list = []

    def trav(node, batch_index):
        size = len(node)
        if not size:
            return None
        index, current_node, children_index, children = [], [], [], []
        for i in range(size):
            if node[i][0] != -1:
                index.append(i)
                current_node.append(node[i][0])
                temp = node[i][1:]
                for j in range(len(temp)):
                    if temp[j][0] != -1:
                        if len(children_index) <= j:
                            children_index.append([i])
                            children.append([temp[j]])
                        else:
                            children_index[j].append(i)
                            children[j].append(temp[j])
            else:
                batch_index[i] = -1
        x_scat = jnp.zeros((size, enc.embedding_dim), jnp.float32)
        if index:
            x_scat = x_scat.at[jnp.array(index, jnp.int32)].set(
                enc.embedding[jnp.array(current_node, jnp.int32)]
            )
        cur = x_scat @ enc.Wc_w + enc.Wc_b
        for c in range(len(children)):
            bci = [batch_index[i] for i in children_index[c]]
            tree = trav(children[c], bci)
            if tree is not None:
                cur = cur.at[jnp.array(children_index[c], jnp.int32)].add(tree)
        bi = [i for i in batch_index if i != -1]
        if len(bi) == cur.shape[0]:
            entry = jnp.zeros((bs, enc.encode_dim), jnp.float32)
            node_list.append(entry.at[jnp.array(bi, jnp.int32)].set(cur))
        return cur

    trav(x, list(range(bs)))
    return jnp.max(jnp.stack(node_list), axis=0)


# ----------------------------- Demo -----------------------------

if __name__ == "__main__":
    VOCAB = 16
    EMB_DIM = 128      # == ENCODE_DIM (required by the reference's index_copy semantics)
    ENC_DIM = 128
    BATCH = 2

    key = jax.random.PRNGKey(0)
    enc = BatchTreeEncoderPallas(VOCAB, EMB_DIM, ENC_DIM, BATCH, key)

    # Each tree node: [token_id, child_node, child_node, ...]
    x = [
        [3, [5, [7]], [2]],            # tree for batch element 0
        [1, [4], [6, [8], [9]]],       # tree for batch element 1
    ]

    out = enc.forward(x, BATCH)
    out = jax.block_until_ready(out)

    ref = jax.block_until_ready(reference_forward(enc, x, BATCH))

    assert out.shape == (BATCH, ENC_DIM)
    assert bool(jnp.all(jnp.isfinite(out)))
    assert bool(jnp.allclose(out, ref, rtol=1e-4, atol=1e-4)), "mismatch vs pure-JAX reference"
    print("KERNEL_OK")
</pallas_src>

<mosaic_0001>
module attributes {stable_mosaic.version = 11 : i64} {
  func.func @kernel(%arg0: memref<9xi32, #tpu.memory_space<smem>>, %arg1: memref<9xi32, #tpu.memory_space<smem>>, %arg2: memref<16x128xf32, #tpu.memory_space<vmem>>, %arg3: memref<128x128xf32, #tpu.memory_space<vmem>>, %arg4: memref<1x128xf32, #tpu.memory_space<vmem>>, %arg5: memref<3x128xf32, #tpu.memory_space<vmem>>, %arg6: memref<24x128xf32, #tpu.memory_space<vmem>>) attributes {dimension_semantics = [], scalar_prefetch = 0 : i64, scratch_operands = 1 : i64, tpu.core_type = #tpu.core_type<tc>} {
    %c0 = arith.constant 0 : index
    %c0_0 = arith.constant 0 : index
    %0 = vector.load %arg2[%c0, %c0_0] : memref<16x128xf32, #tpu.memory_space<vmem>>, vector<16x128xf32>
    %c0_1 = arith.constant 0 : index
    %c0_2 = arith.constant 0 : index
    %1 = vector.load %arg3[%c0_1, %c0_2] : memref<128x128xf32, #tpu.memory_space<vmem>>, vector<128x128xf32>
    %cst = arith.constant dense<0.000000e+00> : vector<16x128xf32>
    %2 = tpu.matmul %0, %1, %cst {dimension_numbers = #tpu.dot_dimension_numbers<[1], [0], [0], [1], [0, 0, 1, 1], [], []>} : vector<16x128xf32>, vector<128x128xf32>, vector<16x128xf32> -> vector<16x128xf32>
    %c0_3 = arith.constant 0 : index
    %c0_4 = arith.constant 0 : index
    %3 = vector.load %arg4[%c0_3, %c0_4] : memref<1x128xf32, #tpu.memory_space<vmem>>, vector<1x128xf32>
    %4 = vector.broadcast %3 : vector<1x128xf32> to vector<16x128xf32>
    %5 = arith.addf %2, %4 : vector<16x128xf32>
    %c0_5 = arith.constant 0 : index
    %c0_6 = arith.constant 0 : index
    %6 = vector.load %arg6[%c0_5, %c0_6] : memref<24x128xf32, #tpu.memory_space<vmem>>, vector<16x128xf32>
    tpu.vector_store %arg6[%c0_5, %c0_6], %5 {strides = array<i32>} : memref<24x128xf32, #tpu.memory_space<vmem>>, vector<16x128xf32>,
    %cst_7 = arith.constant 0.000000e+00 : f32
    %7 = vector.broadcast %cst_7 : f32 to vector<8x128xf32>
    %c16 = arith.constant 16 : index
    %c0_8 = arith.constant 0 : index
    %8 = vector.load %arg6[%c16, %c0_8] : memref<24x128xf32, #tpu.memory_space<vmem>>, vector<8x128xf32>
    tpu.vector_store %arg6[%c16, %c0_8], %7 {strides = array<i32>} : memref<24x128xf32, #tpu.memory_space<vmem>>, vector<8x128xf32>,
    %cst_9 = arith.constant 0.000000e+00 : f32
    %9 = vector.broadcast %cst_9 : f32 to vector<3x128xf32>
    %c0_10 = arith.constant 0 : index
    %c0_11 = arith.constant 0 : index
    %10 = vector.load %arg5[%c0_10, %c0_11] : memref<3x128xf32, #tpu.memory_space<vmem>>, vector<3x128xf32>
    tpu.vector_store %arg5[%c0_10, %c0_11], %9 {strides = array<i32>} : memref<3x128xf32, #tpu.memory_space<vmem>>, vector<3x128xf32>,
    %c8 = arith.constant 8 : index
    %c0_12 = arith.constant 0 : index
    %11 = vector.load %arg6[%c8, %c0_12] : memref<24x128xf32, #tpu.memory_space<vmem>>, vector<1x128xf32>
    %c6 = arith.constant 6 : index
    %c0_13 = arith.constant 0 : index
    %12 = vector.load %arg6[%c6, %c0_13] : memref<24x128xf32, #tpu.memory_space<vmem>>, vector<1x128xf32>
    %13 = arith.addf %12, %11 : vector<1x128xf32>
    %c6_14 = arith.constant 6 : index
    %c0_15 = arith.constant 0 : index
    %14 = vector.load %arg6[%c6_14, %c0_15] : memref<24x128xf32, #tpu.memory_space<vmem>>, vector<1x128xf32>
    tpu.vector_store %arg6[%c6_14, %c0_15], %13 {strides = array<i32>} : memref<24x128xf32, #tpu.memory_space<vmem>>, vector<1x128xf32>,
    %c1 = arith.constant 1 : index
    %c0_16 = arith.constant 0 : index
    %15 = vector.load %arg5[%c1, %c0_16] : memref<3x128xf32, #tpu.memory_space<vmem>>, vector<1x128xf32>
    %16 = arith.maximumf %15, %11 : vector<1x128xf32>
    %c1_17 = arith.constant 1 : index
    %c0_18 = arith.constant 0 : index
    %17 = vector.load %arg5[%c1_17, %c0_18] : memref<3x128xf32, #tpu.memory_space<vmem>>, vector<1x128xf32>
    tpu.vector_store %arg5[%c1_17, %c0_18], %16 {strides = array<i32>} : memref<3x128xf32, #tpu.memory_space<vmem>>, vector<1x128xf32>,
    %c7 = arith.constant 7 : index
    %c0_19 = arith.constant 0 : index
    %18 = vector.load %arg6[%c7, %c0_19] : memref<24x128xf32, #tpu.memory_space<vmem>>, vector<1x128xf32>
    %c6_20 = arith.constant 6 : index
    %c0_21 = arith.constant 0 : index
    %19 = vector.load %arg6[%c6_20, %c0_21] : memref<24x128xf32, #tpu.memory_space<vmem>>, vector<1x128xf32>
    %20 = arith.addf %19, %18 : vector<1x128xf32>
    %c6_22 = arith.constant 6 : index
    %c0_23 = arith.constant 0 : index
    %21 = vector.load %arg6[%c6_22, %c0_23] : memref<24x128xf32, #tpu.memory_space<vmem>>, vector<1x128xf32>
    tpu.vector_store %arg6[%c6_22, %c0_23], %20 {strides = array<i32>} : memref<24x128xf32, #tpu.memory_space<vmem>>, vector<1x128xf32>,
    %c1_24 = arith.constant 1 : index
    %c0_25 = arith.constant 0 : index
    %22 = vector.load %arg5[%c1_24, %c0_25] : memref<3x128xf32, #tpu.memory_space<vmem>>, vector<1x128xf32>
    %23 = arith.maximumf %22, %18 : vector<1x128xf32>
    %c1_26 = arith.constant 1 : index
    %c0_27 = arith.constant 0 : index
    %24 = vector.load %arg5[%c1_26, %c0_27] : memref<3x128xf32, #tpu.memory_space<vmem>>, vector<1x128xf32>
    tpu.vector_store %arg5[%c1_26, %c0_27], %23 {strides = array<i32>} : memref<3x128xf32, #tpu.memory_space<vmem>>, vector<1x128xf32>,
    %c6_28 = arith.constant 6 : index
    %c0_29 = arith.constant 0 : index
    %25 = vector.load %arg6[%c6_28, %c0_29] : memref<24x128xf32, #tpu.memory_space<vmem>>, vector<1x128xf32>
    %c1_30 = arith.constant 1 : index
    %c0_31 = arith.constant 0 : index
    %26 = vector.load %arg6[%c1_30, %c0_31] : memref<24x128xf32, #tpu.memory_space<vmem>>, vector<1x128xf32>
    %27 = arith.addf %26, %25 : vector<1x128xf32>
    %c1_32 = arith.constant 1 : index
    %c0_33 = arith.constant 0 : index
    %28 = vector.load %arg6[%c1_32, %c0_33] : memref<24x128xf32, #tpu.memory_space<vmem>>, vector<1x128xf32>
    tpu.vector_store %arg6[%c1_32, %c0_33], %27 {strides = array<i32>} : memref<24x128xf32, #tpu.memory_space<vmem>>, vector<1x128xf32>,
    %c1_34 = arith.constant 1 : index
    %c0_35 = arith.constant 0 : index
    %29 = vector.load %arg5[%c1_34, %c0_35] : memref<3x128xf32, #tpu.memory_space<vmem>>, vector<1x128xf32>
    %30 = arith.maximumf %29, %25 : vector<1x128xf32>
    %c1_36 = arith.constant 1 : index
    %c0_37 = arith.constant 0 : index
    %31 = vector.load %arg5[%c1_36, %c0_37] : memref<3x128xf32, #tpu.memory_space<vmem>>, vector<1x128xf32>
    tpu.vector_store %arg5[%c1_36, %c0_37], %30 {strides = array<i32>} : memref<3x128xf32, #tpu.memory_space<vmem>>, vector<1x128xf32>,
    %c5 = arith.constant 5 : index
    %c0_38 = arith.constant 0 : index
    %32 = vector.load %arg6[%c5, %c0_38] : memref<24x128xf32, #tpu.memory_space<vmem>>, vector<1x128xf32>
    %c0_39 = arith.constant 0 : index
    %c0_40 = arith.constant 0 : index
    %33 = vector.load %arg6[%c0_39, %c0_40] : memref<24x128xf32, #tpu.memory_space<vmem>>, vector<1x128xf32>
    %34 = arith.addf %33, %32 : vector<1x128xf32>
    %c0_41 = arith.constant 0 : index
    %c0_42 = arith.constant 0 : index
    %35 = vector.load %arg6[%c0_41, %c0_42] : memref<24x128xf32, #tpu.memory_space<vmem>>, vector<1x128xf32>
    tpu.vector_store %arg6[%c0_41, %c0_42], %34 {strides = array<i32>} : memref<24x128xf32, #tpu.memory_space<vmem>>, vector<1x128xf32>,
    %c0_43 = arith.constant 0 : index
    %c0_44 = arith.constant 0 : index
    %36 = vector.load %arg5[%c0_43, %c0_44] : memref<3x128xf32, #tpu.memory_space<vmem>>, vector<1x128xf32>
    %37 = arith.maximumf %36, %32 : vector<1x128xf32>
    %c0_45 = arith.constant 0 : index
    %c0_46 = arith.constant 0 : index
    %38 = vector.load %arg5[%c0_45, %c0_46] : memref<3x128xf32, #tpu.memory_space<vmem>>, vector<1x128xf32>
    tpu.vector_store %arg5[%c0_45, %c0_46], %37 {strides = array<i32>} : memref<3x128xf32, #tpu.memory_space<vmem>>, vector<1x128xf32>,
    %c4 = arith.constant 4 : index
    %c0_47 = arith.constant 0 : index
    %39 = vector.load %arg6[%c4, %c0_47] : memref<24x128xf32, #tpu.memory_space<vmem>>, vector<1x128xf32>
    %c2 = arith.constant 2 : index
    %c0_48 = arith.constant 0 : index
    %40 = vector.load %arg6[%c2, %c0_48] : memref<24x128xf32, #tpu.memory_space<vmem>>, vector<1x128xf32>
    %41 = arith.addf %40, %39 : vector<1x128xf32>
    %c2_49 = arith.constant 2 : index
    %c0_50 = arith.constant 0 : index
    %42 = vector.load %arg6[%c2_49, %c0_50] : memref<24x128xf32, #tpu.memory_space<vmem>>, vector<1x128xf32>
    tpu.vector_store %arg6[%c2_49, %c0_50], %41 {strides = array<i32>} : memref<24x128xf32, #tpu.memory_space<vmem>>, vector<1x128xf32>,
    %c0_51 = arith.constant 0 : index
    %c0_52 = arith.constant 0 : index
    %43 = vector.load %arg5[%c0_51, %c0_52] : memref<3x128xf32, #tpu.memory_space<vmem>>, vector<1x128xf32>
    %44 = arith.maximumf %43, %39 : vector<1x128xf32>
    %c0_53 = arith.constant 0 : index
    %c0_54 = arith.constant 0 : index
    %45 = vector.load %arg5[%c0_53, %c0_54] : memref<3x128xf32, #tpu.memory_space<vmem>>, vector<1x128xf32>
    tpu.vector_store %arg5[%c0_53, %c0_54], %44 {strides = array<i32>} : memref<3x128xf32, #tpu.memory_space<vmem>>, vector<1x128xf32>,
    %c3 = arith.constant 3 : index
    %c0_55 = arith.constant 0 : index
    %46 = vector.load %arg6[%c3, %c0_55] : memref<24x128xf32, #tpu.memory_space<vmem>>, vector<1x128xf32>
    %c1_56 = arith.constant 1 : index
    %c0_57 = arith.constant 0 : index
    %47 = vector.load %arg6[%c1_56, %c0_57] : memref<24x128xf32, #tpu.memory_space<vmem>>, vector<1x128xf32>
    %48 = arith.addf %47, %46 : vector<1x128xf32>
    %c1_58 = arith.constant 1 : index
    %c0_59 = arith.constant 0 : index
    %49 = vector.load %arg6[%c1_58, %c0_59] : memref<24x128xf32, #tpu.memory_space<vmem>>, vector<1x128xf32>
    tpu.vector_store %arg6[%c1_58, %c0_59], %48 {strides = array<i32>} : memref<24x128xf32, #tpu.memory_space<vmem>>, vector<1x128xf32>,
    %c1_60 = arith.constant 1 : index
    %c0_61 = arith.constant 0 : index
    %50 = vector.load %arg5[%c1_60, %c0_61] : memref<3x128xf32, #tpu.memory_space<vmem>>, vector<1x128xf32>
    %51 = arith.maximumf %50, %46 : vector<1x128xf32>
    %c1_62 = arith.constant 1 : index
    %c0_63 = arith.constant 0 : index
    %52 = vector.load %arg5[%c1_62, %c0_63] : memref<3x128xf32, #tpu.memory_space<vmem>>, vector<1x128xf32>
    tpu.vector_store %arg5[%c1_62, %c0_63], %51 {strides = array<i32>} : memref<3x128xf32, #tpu.memory_space<vmem>>, vector<1x128xf32>,
    %c2_64 = arith.constant 2 : index
    %c0_65 = arith.constant 0 : index
    %53 = vector.load %arg6[%c2_64, %c0_65] : memref<24x128xf32, #tpu.memory_space<vmem>>, vector<1x128xf32>
    %c0_66 = arith.constant 0 : index
    %c0_67 = arith.constant 0 : index
    %54 = vector.load %arg6[%c0_66, %c0_67] : memref<24x128xf32, #tpu.memory_space<vmem>>, vector<1x128xf32>
    %55 = arith.addf %54, %53 : vector<1x128xf32>
    %c0_68 = arith.constant 0 : index
    %c0_69 = arith.constant 0 : index
    %56 = vector.load %arg6[%c0_68, %c0_69] : memref<24x128xf32, #tpu.memory_space<vmem>>, vector<1x128xf32>
    tpu.vector_store %arg6[%c0_68, %c0_69], %55 {strides = array<i32>} : memref<24x128xf32, #tpu.memory_space<vmem>>, vector<1x128xf32>,
    %c0_70 = arith.constant 0 : index
    %c0_71 = arith.constant 0 : index
    %57 = vector.load %arg5[%c0_70, %c0_71] : memref<3x128xf32, #tpu.memory_space<vmem>>, vector<1x128xf32>
    %58 = arith.maximumf %57, %53 : vector<1x128xf32>
    %c0_72 = arith.constant 0 : index
    %c0_73 = arith.constant 0 : index
    %59 = vector.load %arg5[%c0_72, %c0_73] : memref<3x128xf32, #tpu.memory_space<vmem>>, vector<1x128xf32>
    tpu.vector_store %arg5[%c0_72, %c0_73], %58 {strides = array<i32>} : memref<3x128xf32, #tpu.memory_space<vmem>>, vector<1x128xf32>,
    %c1_74 = arith.constant 1 : index
    %c0_75 = arith.constant 0 : index
    %60 = vector.load %arg6[%c1_74, %c0_75] : memref<24x128xf32, #tpu.memory_space<vmem>>, vector<1x128xf32>
    %c16_76 = arith.constant 16 : index
    %c0_77 = arith.constant 0 : index
    %61 = vector.load %arg6[%c16_76, %c0_77] : memref<24x128xf32, #tpu.memory_space<vmem>>, vector<1x128xf32>
    %62 = arith.addf %61, %60 : vector<1x128xf32>
    %c16_78 = arith.constant 16 : index
    %c0_79 = arith.constant 0 : index
    %63 = vector.load %arg6[%c16_78, %c0_79] : memref<24x128xf32, #tpu.memory_space<vmem>>, vector<1x128xf32>
    tpu.vector_store %arg6[%c16_78, %c0_79], %62 {strides = array<i32>} : memref<24x128xf32, #tpu.memory_space<vmem>>, vector<1x128xf32>,
    %c1_80 = arith.constant 1 : index
    %c0_81 = arith.constant 0 : index
    %64 = vector.load %arg5[%c1_80, %c0_81] : memref<3x128xf32, #tpu.memory_space<vmem>>, vector<1x128xf32>
    %65 = arith.maximumf %64, %60 : vector<1x128xf32>
    %c1_82 = arith.constant 1 : index
    %c0_83 = arith.constant 0 : index
    %66 = vector.load %arg5[%c1_82, %c0_83] : memref<3x128xf32, #tpu.memory_space<vmem>>, vector<1x128xf32>
    tpu.vector_store %arg5[%c1_82, %c0_83], %65 {strides = array<i32>} : memref<3x128xf32, #tpu.memory_space<vmem>>, vector<1x128xf32>,
    %c0_84 = arith.constant 0 : index
    %c0_85 = arith.constant 0 : index
    %67 = vector.load %arg6[%c0_84, %c0_85] : memref<24x128xf32, #tpu.memory_space<vmem>>, vector<1x128xf32>
    %c16_86 = arith.constant 16 : index
    %c0_87 = arith.constant 0 : index
    %68 = vector.load %arg6[%c16_86, %c0_87] : memref<24x128xf32, #tpu.memory_space<vmem>>, vector<1x128xf32>
    %69 = arith.addf %68, %67 : vector<1x128xf32>
    %c16_88 = arith.constant 16 : index
    %c0_89 = arith.constant 0 : index
    %70 = vector.load %arg6[%c16_88, %c0_89] : memref<24x128xf32, #tpu.memory_space<vmem>>, vector<1x128xf32>
    tpu.vector_store %arg6[%c16_88, %c0_89], %69 {strides = array<i32>} : memref<24x128xf32, #tpu.memory_space<vmem>>, vector<1x128xf32>,
    %c0_90 = arith.constant 0 : index
    %c0_91 = arith.constant 0 : index
    %71 = vector.load %arg5[%c0_90, %c0_91] : memref<3x128xf32, #tpu.memory_space<vmem>>, vector<1x128xf32>
    %72 = arith.maximumf %71, %67 : vector<1x128xf32>
    %c0_92 = arith.constant 0 : index
    %c0_93 = arith.constant 0 : index
    %73 = vector.load %arg5[%c0_92, %c0_93] : memref<3x128xf32, #tpu.memory_space<vmem>>, vector<1x128xf32>
    tpu.vector_store %arg5[%c0_92, %c0_93], %72 {strides = array<i32>} : memref<3x128xf32, #tpu.memory_space<vmem>>, vector<1x128xf32>,
    return
  }
}

</mosaic_0001>

<llo_original>
// kernel: tpu_custom_call.1
$region0: #{tpu_custom_call.1}
  #allocation0 [shape = 'u32[]', space=smem, size = 0x4, offset = 0x4, fixed_abs, tag = 'smem constant byte address 0x4 - core index']
  #allocation1 [shape = 'u32[144,128]{1,0:T(1,128)}', space=vmem, size = 0x12000, scoped, tag = 'internal scratch']
  #allocation2 [shape = 'f32[24,128]{1,0:T(8,128)}', space=vmem, size = 0x3000, scoped, tag = 'scratch operand']
  %s0 = inlined_call_operand.hbm [shape: s32[9], index: 0, kind: input, shape index: {}]
  %s1 = inlined_call_operand.vmem [shape: s32[9], index: 1, kind: input, shape index: {}]
  %s2 = inlined_call_operand.hbm [shape: f32[16,128], index: 2, kind: input, shape index: {}]
  %s3 = inlined_call_operand.hbm [shape: f32[128,128], index: 3, kind: input, shape index: {}]
  %s4 = inlined_call_operand.vmem [shape: f32[1,128], index: 4, kind: input, shape index: {}]
  %s5 = inlined_call_operand.hbm [shape: f32[3,128], index: 5, kind: output, shape index: {}]
  %s6 = sld [smem:[#allocation0]]
  $region46: #{tpu_custom_call.1} parent=0
    _
  %s8 = ssub.s32 1, %s6
  %s9 = scalar_select 0, %s8, %s6
  $region1: #{tpu_custom_call.1} parent=0
    #allocation3 [shape = 'u8[512]{0}', space=smem, size = 0x200, scoped, tag = 'input window, operand 0, single buffered']
    #allocation4 [shape = 's32[1]{0}', space=sflag, size = 0x4, scoped, tag = 'scoped memory for tpu_custom_call.1']
    #allocation5 [shape = 's32[1]{0}', space=sflag, size = 0x4, scoped, tag = 'scoped memory for tpu_custom_call.1']
    #allocation6 [shape = 's32[1]{0}', space=sflag, size = 0x4, scoped, tag = 'scoped memory for tpu_custom_call.1']
    #allocation7 [shape = 's32[1]{0}', space=sflag, size = 0x4, scoped, tag = 'scoped memory for tpu_custom_call.1']
    #allocation8 [shape = 'u8[512]{0}', space=smem, size = 0x200, scoped, tag = 'input window, operand 1, single buffered']
    #allocation9 [shape = 'u8[8192]{0}', space=vmem, size = 0x2000, scoped, tag = 'input window, operand 2, single buffered']
    #allocation10 [shape = 'u8[65536]{0}', space=vmem, size = 0x10000, scoped, tag = 'input window, operand 3, single buffered']
    #allocation11 [shape = 's32[1]{0}', space=sflag, size = 0x4, scoped, tag = 'scoped memory for tpu_custom_call.1']
    #allocation12 [shape = 'u8[2048]{0}', space=vmem, size = 0x800, scoped, tag = 'output window, operand 0, single buffered']
    %10 = vsyncpa [#allocation6], 0
    %11 = vsyncpa [#allocation7], 0
    %12 = vsyncpa [#allocation4], 0
    %13 = vsyncpa [#allocation11], 0
    %14 = vsyncpa [#allocation5], 0
    // Predicated region
    $region2: #{tpu_custom_call.1} parent=1 // pred_check
      _
    $region3: #{tpu_custom_call.1} parent=1 // pred_check_branch
      %16 = sbr.rel (0) target = $region5
    $region4: #{tpu_custom_call.1} parent=1 // pred_region
      %s18 = ssub.s32 16, 16
      %19 = vsyncadd [#allocation6], %s18
      %22 = dma.hbm_to_smem %s0, 16, [#allocation3], [#allocation6]
    $region5: #{tpu_custom_call.1} parent=1 // pred_fallthru
      _
    // Predicated region
    $region6: #{tpu_custom_call.1} parent=1 // pred_check
      _
    $region7: #{tpu_custom_call.1} parent=1 // pred_check_branch
      %24 = sbr.rel (0) target = $region9
    $region8: #{tpu_custom_call.1} parent=1 // pred_region
      %s26 = ssub.s32 16, 16
      %27 = vsyncadd [#allocation7], %s26
      %s29 = sshll.u32 %s1, 4
      %s30 = int_to_ptr.vmem [resolvable:$true] %s29
      %32 = dma.vmem_to_smem %s30, 16, [#allocation8], [#allocation7]
    $region9: #{tpu_custom_call.1} parent=1 // pred_fallthru
      _
    // Predicated region
    $region10: #{tpu_custom_call.1} parent=1 // pred_check
      _
    $region11: #{tpu_custom_call.1} parent=1 // pred_check_branch
      %34 = sbr.rel (0) target = $region13
    $region12: #{tpu_custom_call.1} parent=1 // pred_region
      %s36 = ssub.s32 256, 256
      %37 = vsyncadd [#allocation4], %s36
      %s38 = sshll.u32 [#allocation9], 4
      %s39 = int_to_ptr.vmem [resolvable:$true] %s38
      %44 = dma.hbm_to_vmem [thread:$0]  %s2, 256, %s39, [#allocation4], 128, 128, 8
    $region13: #{tpu_custom_call.1} parent=1 // pred_fallthru
      _
    // Predicated region
    $region14: #{tpu_custom_call.1} parent=1 // pred_check
      _
    $region15: #{tpu_custom_call.1} parent=1 // pred_check_branch
      %46 = sbr.rel (0) target = $region17
    $region16: #{tpu_custom_call.1} parent=1 // pred_region
      %s48 = ssub.s32 2048, 2048
      %49 = vsyncadd [#allocation11], %s48
      %s50 = sshll.u32 [#allocation10], 4
      %s51 = int_to_ptr.vmem [resolvable:$true] %s50
      %56 = dma.hbm_to_vmem [thread:$0]  %s3, 2048, %s51, [#allocation11], 128, 128, 8
    $region17: #{tpu_custom_call.1} parent=1 // pred_fallthru
      _
    // Predicated region
    $region18: #{tpu_custom_call.1} parent=1 // pred_check
      _
    $region19: #{tpu_custom_call.1} parent=1 // pred_check_branch
      %58 = sbr.rel (0) target = $region21
    $region20: #{tpu_custom_call.1} parent=1 // pred_region
      _
    $region21: #{tpu_custom_call.1} parent=1 // pred_fallthru
      _
    // Predicated region
    $region22: #{tpu_custom_call.1} parent=1 // pred_check
      _
    $region23: #{tpu_custom_call.1} parent=1 // pred_check_branch
      %60 = sbr.rel (0) target = $region25
    $region24: #{tpu_custom_call.1} parent=1 // pred_region
      %61 = dma.done [#allocation6], 16
    $region25: #{tpu_custom_call.1} parent=1 // pred_fallthru
      _
    // Predicated region
    $region26: #{tpu_custom_call.1} parent=1 // pred_check
      _
    $region27: #{tpu_custom_call.1} parent=1 // pred_check_branch
      %63 = sbr.rel (0) target = $region29
    $region28: #{tpu_custom_call.1} parent=1 // pred_region
      %64 = dma.done [#allocation7], 16
    $region29: #{tpu_custom_call.1} parent=1 // pred_fallthru
      _
    // Predicated region
    $region30: #{tpu_custom_call.1} parent=1 // pred_check
      _
    $region31: #{tpu_custom_call.1} parent=1 // pred_check_branch
      %66 = sbr.rel (0) target = $region33
    $region32: #{tpu_custom_call.1} parent=1 // pred_region
      %67 = dma.done [#allocation4], 256
    $region33: #{tpu_custom_call.1} parent=1 // pred_fallthru
      _
    // Predicated region
    $region34: #{tpu_custom_call.1} parent=1 // pred_check
      _
    $region35: #{tpu_custom_call.1} parent=1 // pred_check_branch
      %69 = sbr.rel (0) target = $region37
    $region36: #{tpu_custom_call.1} parent=1 // pred_region
      %70 = dma.done [#allocation11], 2048
    $region37: #{tpu_custom_call.1} parent=1 // pred_fallthru
      _
    %71 = sfence
    %v72 = vld [vmem:[#allocation9] sm:$0xff]
    %v73 = vld [vmem:[#allocation9 + $0x8] sm:$0xff]
    %v74 = vld [vmem:[#allocation10] sm:$0xff]
    %v75 = vld [vmem:[#allocation10 + $0x8] sm:$0xff]
    %v76 = vld [vmem:[#allocation10 + $0x10] sm:$0xff]
    %v77 = vld [vmem:[#allocation10 + $0x18] sm:$0xff]
    %v78 = vld [vmem:[#allocation10 + $0x20] sm:$0xff]
    %v79 = vld [vmem:[#allocation10 + $0x28] sm:$0xff]
    %v80 = vld [vmem:[#allocation10 + $0x30] sm:$0xff]
    %v81 = vld [vmem:[#allocation10 + $0x38] sm:$0xff]
    %v82 = vld [vmem:[#allocation10 + $0x40] sm:$0xff]
    %v83 = vld [vmem:[#allocation10 + $0x48] sm:$0xff]
    %v84 = vld [vmem:[#allocation10 + $0x50] sm:$0xff]
    %v85 = vld [vmem:[#allocation10 + $0x58] sm:$0xff]
    %v86 = vld [vmem:[#allocation10 + $0x60] sm:$0xff]
    %v87 = vld [vmem:[#allocation10 + $0x68] sm:$0xff]
    %v88 = vld [vmem:[#allocation10 + $0x70] sm:$0xff]
    %v89 = vld [vmem:[#allocation10 + $0x78] sm:$0xff]
    %v90 = vld [vmem:[%s4] sm:$0x1]
    %v92 = vlaneseq
    %v93 = vshrl.u32 %v92, 7
    %v94 = vsub.s32 0, %v93
    %v95 = vrot.slane %v90, %v94
    %97 = vmatprep.subr.mxu0 0.0
    %98 = vmatpush1.msra.mxu0 %v74
    %99 = vmatprep.subr.mxu0 0.0
    %100 = vmatpush1.msra.mxu0 %v75
    %101 = vmatprep.subr.mxu0 0.0
    %102 = vmatpush1.msra.mxu0 %v76
    %103 = vmatprep.subr.mxu0 0.0
    %104 = vmatpush1.msra.mxu0 %v77
    %105 = vmatprep.subr.mxu0 0.0
    %106 = vmatpush1.msra.mxu0 %v78
    %107 = vmatprep.subr.mxu0 0.0
    %108 = vmatpush1.msra.mxu0 %v79
    %109 = vmatprep.subr.mxu0 0.0
    %110 = vmatpush1.msra.mxu0 %v80
    %111 = vmatprep.subr.mxu0 0.0
    %112 = vmatpush1.msra.mxu0 %v81
    %113 = vmatprep.subr.mxu0 0.0
    %114 = vmatpush1.msra.mxu0 %v82
    %115 = vmatprep.subr.mxu0 0.0
    %116 = vmatpush1.msra.mxu0 %v83
    %117 = vmatprep.subr.mxu0 0.0
    %118 = vmatpush1.msra.mxu0 %v84
    %119 = vmatprep.subr.mxu0 0.0
    %120 = vmatpush1.msra.mxu0 %v85
    %121 = vmatprep.subr.mxu0 0.0
    %122 = vmatpush1.msra.mxu0 %v86
    %123 = vmatprep.subr.mxu0 0.0
    %124 = vmatpush1.msra.mxu0 %v87
    %125 = vmatprep.subr.mxu0 0.0
    %126 = vmatpush1.msra.mxu0 %v88
    %127 = vmatprep.subr.mxu0 0.0
    %128 = vmatpush1.msra.mxu0 %v89
    %129 = vmatprep.subr.mxu0 0.0
    %130 = vmatpush1.msra.mxu0 0.0
    %131 = vmatprep.subr.mxu0 0.0
    %132 = vmatpush1.msra.mxu0 0.0
    %133 = vmatprep.subr.mxu0 0.0
    %134 = vmatpush1.msra.mxu0 0.0
    %135 = vmatprep.subr.mxu0 0.0
    %136 = vmatpush1.msra.mxu0 0.0
    %137 = vmatprep.subr.mxu0 0.0
    %138 = vmatpush1.msra.mxu0 0.0
    %139 = vmatprep.subr.mxu0 0.0
    %140 = vmatpush1.msra.mxu0 0.0
    %141 = vmatprep.subr.mxu0 0.0
    %142 = vmatpush1.msra.mxu0 0.0
    %143 = vmatprep.subr.mxu0 0.0
    %144 = vmatpush1.msra.mxu0 0.0
    %145 = vmatprep.subr.mxu0 0.0
    %146 = vmatpush1.msra.mxu0 0.0
    %147 = vmatprep.subr.mxu0 0.0
    %148 = vmatpush1.msra.mxu0 0.0
    %149 = vmatprep.subr.mxu0 0.0
    %150 = vmatpush1.msra.mxu0 0.0
    %151 = vmatprep.subr.mxu0 0.0
    %152 = vmatpush1.msra.mxu0 0.0
    %153 = vmatprep.subr.mxu0 0.0
    %154 = vmatpush1.msra.mxu0 0.0
    %155 = vmatprep.subr.mxu0 0.0
    %156 = vmatpush1.msra.mxu0 0.0
    %157 = vmatprep.subr.mxu0 0.0
    %158 = vmatpush1.msra.mxu0 0.0
    %159 = vmatprep.subr.mxu0 0.0
    %160 = vmatpush1.msra.mxu0 0.0
    %161 = vmatprep.mubr.f32.mxu0 0.0
    %162 = vmatmul.mubr.f32.gmra.mrb[0].mxu0 %v72
    %v163 = vpop.f32.mrb[0].mxu0
    %v164 = vadd.f32 %v95, %v163
    %v165 = vpop.f32.mrb[0].mxu0
    %166 = vmatprep.mubr.f32.mxu0 0.0
    %167 = vmatmul.mubr.f32.gmra.mrb[0].mxu0 %v73
    %v168 = vpop.f32.mrb[0].mxu0
    %v169 = vadd.f32 %v95, %v168
    %v170 = vpop.f32.mrb[0].mxu0
    %171 = vdwg.mxu0
    %172 = vst [vmem:[#allocation2] sm:$0xff] %v164
    %173 = vst [vmem:[#allocation2 + $0x8] sm:$0xff] %v169
    %174 = vst [vmem:[#allocation2 + $0x10] sm:$0xff] 0.0
    %175 = vst [vmem:[#allocation12] sm:$0x7] 0.0
    %v176 = vld [vmem:[#allocation2 + $0x8] sm:$0x1]
    %v177 = vld [vmem:[#allocation2 + $0x6] sm:$0x1]
    %v178 = vadd.f32 %v177, %v176
    %179 = vst [vmem:[#allocation2 + $0x6] sm:$0x1] %v178
    %v180 = vld [vmem:[#allocation12 + $0x1] sm:$0x1]
    %v181 = vmax.f32 %v180, %v176
    %182 = vst [vmem:[#allocation12 + $0x1] sm:$0x1] %v181
    %v183 = vld [vmem:[#allocation2 + $0x7] sm:$0x1]
    %v184 = vld [vmem:[#allocation2 + $0x6] sm:$0x1]
    %v185 = vadd.f32 %v184, %v183
    %186 = vst [vmem:[#allocation2 + $0x6] sm:$0x1] %v185
    %v187 = vld [vmem:[#allocation12 + $0x1] sm:$0x1]
    %v188 = vmax.f32 %v187, %v183
    %189 = vst [vmem:[#allocation12 + $0x1] sm:$0x1] %v188
    %v190 = vld [vmem:[#allocation2 + $0x6] sm:$0x1]
    %v191 = vld [vmem:[#allocation2 + $0x1] sm:$0x1]
    %v192 = vadd.f32 %v191, %v190
    %193 = vst [vmem:[#allocation2 + $0x1] sm:$0x1] %v192
    %v194 = vld [vmem:[#allocation12 + $0x1] sm:$0x1]
    %v195 = vmax.f32 %v194, %v190
    %196 = vst [vmem:[#allocation12 + $0x1] sm:$0x1] %v195
    %v197 = vld [vmem:[#allocation2 + $0x5] sm:$0x1]
    %v198 = vld [vmem:[#allocation2] sm:$0x1]
    %v199 = vadd.f32 %v198, %v197
    %200 = vst [vmem:[#allocation2] sm:$0x1] %v199
    %v201 = vld [vmem:[#allocation12] sm:$0x1]
    %v202 = vmax.f32 %v201, %v197
    %203 = vst [vmem:[#allocation12] sm:$0x1] %v202
    %v204 = vld [vmem:[#allocation2 + $0x4] sm:$0x1]
    %v205 = vld [vmem:[#allocation2 + $0x2] sm:$0x1]
    %v206 = vadd.f32 %v205, %v204
    %207 = vst [vmem:[#allocation2 + $0x2] sm:$0x1] %v206
    %v208 = vld [vmem:[#allocation12] sm:$0x1]
    %v209 = vmax.f32 %v208, %v204
    %210 = vst [vmem:[#allocation12] sm:$0x1] %v209
    %v211 = vld [vmem:[#allocation2 + $0x3] sm:$0x1]
    %v212 = vld [vmem:[#allocation2 + $0x1] sm:$0x1]
    %v213 = vadd.f32 %v212, %v211
    %214 = vst [vmem:[#allocation2 + $0x1] sm:$0x1] %v213
    %v215 = vld [vmem:[#allocation12 + $0x1] sm:$0x1]
    %v216 = vmax.f32 %v215, %v211
    %217 = vst [vmem:[#allocation12 + $0x1] sm:$0x1] %v216
    %v218 = vld [vmem:[#allocation2 + $0x2] sm:$0x1]
    %v219 = vld [vmem:[#allocation2] sm:$0x1]
    %v220 = vadd.f32 %v219, %v218
    %221 = vst [vmem:[#allocation2] sm:$0x1] %v220
    %v222 = vld [vmem:[#allocation12] sm:$0x1]
    %v223 = vmax.f32 %v222, %v218
    %224 = vst [vmem:[#allocation12] sm:$0x1] %v223
    %v225 = vld [vmem:[#allocation2 + $0x1] sm:$0x1]
    %v226 = vld [vmem:[#allocation2 + $0x10] sm:$0x1]
    %v227 = vadd.f32 %v226, %v225
    %228 = vst [vmem:[#allocation2 + $0x10] sm:$0x1] %v227
    %v229 = vld [vmem:[#allocation12 + $0x1] sm:$0x1]
    %v230 = vmax.f32 %v229, %v225
    %231 = vst [vmem:[#allocation12 + $0x1] sm:$0x1] %v230
    %v232 = vld [vmem:[#allocation2] sm:$0x1]
    %v233 = vld [vmem:[#allocation2 + $0x10] sm:$0x1]
    %v234 = vadd.f32 %v233, %v232
    %235 = vst [vmem:[#allocation2 + $0x10] sm:$0x1] %v234
    %v236 = vld [vmem:[#allocation12] sm:$0x1]
    %v237 = vmax.f32 %v236, %v232
    %238 = vst [vmem:[#allocation12] sm:$0x1] %v237
    // Predicated region
    $region38: #{tpu_custom_call.1} parent=1 // pred_check
      _
    $region39: #{tpu_custom_call.1} parent=1 // pred_check_branch
      %240 = sbr.rel (0) target = $region41
    $region40: #{tpu_custom_call.1} parent=1 // pred_region
      %s242 = ssub.s32 64, 64
      %243 = vsyncadd [#allocation5], %s242
      %s245 = sshll.u32 [#allocation12], 4
      %s246 = int_to_ptr.vmem [resolvable:$true] %s245
      %248 = dma.vmem_to_hbm [thread:$0]  %s246, 64, %s5, [#allocation5]
    $region41: #{tpu_custom_call.1} parent=1 // pred_fallthru
      _
    // Predicated region
    $region42: #{tpu_custom_call.1} parent=1 // pred_check
      _
    $region43: #{tpu_custom_call.1} parent=1 // pred_check_branch
      %250 = sbr.rel (0) target = $region45
    $region44: #{tpu_custom_call.1} parent=1 // pred_region
      %251 = dma.done [#allocation5], 64
    $region45: #{tpu_custom_call.1} parent=1 // pred_fallthru
      _
    %252 = vsyncpa [#allocation4], 1
    %253 = vsyncpa [#allocation11], 1
    %254 = vsyncpa [#allocation5], 1
    %255 = vsyncpa [#allocation6], 1
    %256 = vsyncpa [#allocation7], 1

</llo_original>
